<compile_context>
chip_gen: v7x
topology: tpu7x:2x2x1
jax: 0.10.0
libtpu: 0.0.40
codegen_flags: <defaults>
</compile_context>

<pallas_src>
import jax
import jax.numpy as jnp
from jax import lax
from jax.experimental import pallas as pl
from jax.experimental.pallas import tpu as pltpu


def _l1_loss_kernel(ind_ref, feat_ref, target_ref, mask_ref, out_ref, acc_ref):
    # ind_ref:    VMEM (1, 1, K) int32   gather indices for this batch
    # feat_ref:   VMEM (1, C, THW)       channel-major feature-map tile (coalesced slab DMA)
    # target_ref: VMEM (1, C, K)         target, K lane-dense
    # mask_ref:   VMEM (1, 1, K)
    # out_ref:    VMEM (1, 1, 1) f32     per-batch partial sum of |masked diff|
    # acc_ref:    VMEM (C, K)   f32      gathered-pred accumulator across HW tiles
    t = pl.program_id(1)
    thw = feat_ref.shape[2]
    k = ind_ref.shape[2]

    @pl.when(t == 0)
    def _():
        acc_ref[...] = jnp.zeros_like(acc_ref)

    # One-hot gather on the MXU: (C, THW) @ (THW, K) -> (C, K).
    pos = lax.broadcasted_iota(jnp.int32, (thw, k), 0) + t * thw     # global HW position
    onehot = (pos == ind_ref[0]).astype(feat_ref.dtype)              # (THW, K), exact 0/1
    acc_ref[...] += jnp.dot(feat_ref[0], onehot,
                            preferred_element_type=jnp.float32)

    @pl.when(t == pl.num_programs(1) - 1)
    def _():
        pred = acc_ref[...]                                          # (C, K) f32
        tgt = target_ref[0].astype(jnp.float32)                      # (C, K)
        m = mask_ref[0].astype(jnp.float32)                          # (1, K), bcast over C
        # |pred*m - target*m| == |(pred - target) * m|
        out_ref[...] = jnp.sum(jnp.abs((pred - tgt) * m)).reshape(1, 1, 1)


def _pick_hw_tile(hw, c, itemsize, budget_bytes=8 << 20):
    """Largest HW tile (multiple of 128 dividing HW) whose slab fits the budget."""
    if c * hw * itemsize <= budget_bytes or hw % 128 != 0:
        # TODO(synk): HW not a multiple of 128 and slab over budget -> single
        # big tile; rely on vmem_limit_bytes (no ragged-tile masking implemented).
        return hw
    best = 128
    t = 128
    while t <= hw:
        if hw % t == 0 and c * t * itemsize <= budget_bytes:
            best = t
        t += 128
    return best


def l1_loss_pallas(output_nchw, target, mask, ind, hw_tile=None):
    """output_nchw: (N, C, H, W); target: (N, K, C); mask: (N, K); ind: (N, K) int."""
    # TODO(synk): the ind=None passthrough branch (pred = output) of the PyTorch
    # module is not implemented; only the gather path is kernelized.
    n, c, h, w = output_nchw.shape
    k = ind.shape[1]
    hw = h * w

    feat = output_nchw.reshape(n, c, hw)                  # free reshape, stays channel-major
    ind3 = jnp.clip(ind.astype(jnp.int32), 0, hw - 1).reshape(n, 1, k)
    target_ck = jnp.swapaxes(target, 1, 2)                # (N, C, K): K lane-dense in-kernel
    mask3 = mask.astype(jnp.float32).reshape(n, 1, k)
    denom = float(n * k * c)

    itemsize = feat.dtype.itemsize
    if hw_tile is None:
        thw = _pick_hw_tile(hw, c, itemsize)
    else:
        assert hw % hw_tile == 0 and (hw_tile == hw or hw_tile % 128 == 0), \
            "hw_tile must divide H*W and be a multiple of 128 (or equal H*W)"
        thw = hw_tile
    num_t = hw // thw

    # Explicit VMEM budget: double-buffered slab + small per-batch blocks + acc.
    vmem_need = (2 * c * thw * itemsize            # feature slab (double-buffered)
                 + 2 * (c * k + 2 * k) * 4         # target / mask / ind blocks
                 + c * k * 4                       # accumulator scratch
                 + (1 << 20))                      # margin
    vmem_limit = int(min(max(vmem_need + (4 << 20), 16 << 20), 64 << 20))

    grid_spec = pltpu.PrefetchScalarGridSpec(
        num_scalar_prefetch=0,
        grid=(n, num_t),
        in_specs=[
            pl.BlockSpec((1, 1, k), lambda b, t: (b, 0, 0)),      # ind
            pl.BlockSpec((1, c, thw), lambda b, t: (b, 0, t)),    # feature slab tile
            pl.BlockSpec((1, c, k), lambda b, t: (b, 0, 0)),      # target
            pl.BlockSpec((1, 1, k), lambda b, t: (b, 0, 0)),      # mask
        ],
        out_specs=pl.BlockSpec((1, 1, 1), lambda b, t: (b, 0, 0)),
        scratch_shapes=[pltpu.VMEM((c, k), jnp.float32)],
    )

    partial = pl.pallas_call(
        _l1_loss_kernel,
        out_shape=jax.ShapeDtypeStruct((n, 1, 1), jnp.float32),
        grid_spec=grid_spec,
        compiler_params=pltpu.CompilerParams(
            dimension_semantics=("parallel", "arbitrary"),
            vmem_limit_bytes=vmem_limit,
        ),
    )(ind3, feat, target_ck, mask3)

    # elementwise_mean == mean over every element of pred/target (N*K*C).
    return jnp.sum(partial) / denom


def l1_loss_ref(output_nchw, target, mask, ind):
    """Pure-JAX reference mirroring the PyTorch module."""
    n, c, h, w = output_nchw.shape
    k = ind.shape[1]
    feat = jnp.transpose(output_nchw, (0, 2, 3, 1)).reshape(n, h * w, c)
    gather_idx = jnp.broadcast_to(ind[:, :, None].astype(jnp.int32), (n, k, c))
    pred = jnp.take_along_axis(feat, gather_idx, axis=1)          # (N, K, C)
    m = mask[:, :, None].astype(jnp.float32)                      # (N, K, 1)
    return jnp.mean(jnp.abs(pred * m - target * m))


if __name__ == "__main__":
    key = jax.random.PRNGKey(0)
    n, c, h, w, k = 2, 4, 16, 16, 8
    k1, k2, k3, k4 = jax.random.split(key, 4)

    output = jax.random.normal(k1, (n, c, h, w), dtype=jnp.float32)   # NCHW, like PyTorch
    target = jax.random.normal(k2, (n, k, c), dtype=jnp.float32)
    ind = jax.random.randint(k3, (n, k), 0, h * w, dtype=jnp.int32)
    mask = (jax.random.uniform(k4, (n, k)) > 0.3).astype(jnp.float32)

    ref = l1_loss_ref(output, target, mask, ind)

    # Single-tile (whole slab) path.
    loss = jax.block_until_ready(l1_loss_pallas(output, target, mask, ind))
    assert jnp.allclose(loss, ref, rtol=1e-5, atol=1e-5), (loss, ref)

    # Multi-tile path (HW split into 128-wide tiles, exercises the accumulator).
    loss_tiled = jax.block_until_ready(
        l1_loss_pallas(output, target, mask, ind, hw_tile=128))
    assert jnp.allclose(loss_tiled, ref, rtol=1e-5, atol=1e-5), (loss_tiled, ref)

    print("KERNEL_OK")
</pallas_src>

<mosaic_0001>
module attributes {stable_mosaic.version = 11 : i64} {
  func.func @_l1_loss_kernel(%arg0: i32, %arg1: i32, %arg2: memref<1x1x8xi32, #tpu.memory_space<vmem>>, %arg3: memref<1x4x256xf32, #tpu.memory_space<vmem>>, %arg4: memref<1x4x8xf32, #tpu.memory_space<vmem>>, %arg5: memref<1x1x8xf32, #tpu.memory_space<vmem>>, %arg6: memref<1x1x1xf32, #tpu.memory_space<vmem>>, %arg7: memref<4x8xf32, #tpu.memory_space<vmem>>) attributes {dimension_semantics = [#tpu.dimension_semantics<parallel>, #tpu.dimension_semantics<arbitrary>], iteration_bounds = array<i64: 2, 1>, scalar_prefetch = 0 : i64, scratch_operands = 1 : i64, tpu.core_type = #tpu.core_type<tc>, window_params = [{transform_indices = @transform_0, window_bounds = array<i64: 1, 1, 8>}, {transform_indices = @transform_1, window_bounds = array<i64: 1, 4, 256>}, {transform_indices = @transform_2, window_bounds = array<i64: 1, 4, 8>}, {transform_indices = @transform_3, window_bounds = array<i64: 1, 1, 8>}, {transform_indices = @transform_4, window_bounds = array<i64: 1, 1, 1>}]} {
    %c0_i32 = arith.constant 0 : i32
    %0 = arith.cmpi eq, %arg1, %c0_i32 : i32
    %1 = arith.extui %0 : i1 to i32
    %c0_i32_0 = arith.constant 0 : i32
    %2 = arith.cmpi ne, %1, %c0_i32_0 : i32
    scf.if %2 {
      %cst_12 = arith.constant 0.000000e+00 : f32
      %22 = vector.broadcast %cst_12 : f32 to vector<4x8xf32>
      %c0_13 = arith.constant 0 : index
      %c0_14 = arith.constant 0 : index
      %23 = vector.load %arg7[%c0_13, %c0_14] : memref<4x8xf32, #tpu.memory_space<vmem>>, vector<4x8xf32>
      tpu.vector_store %arg7[%c0_13, %c0_14], %22 {strides = array<i32>} : memref<4x8xf32, #tpu.memory_space<vmem>>, vector<4x8xf32>,
    } else {
    }
    %3 = tpu.iota {dimensions = array<i32: 0>} : vector<256x8xi32>
    %c256_i32 = arith.constant 256 : i32
    %4 = arith.muli %arg1, %c256_i32 : i32
    %5 = vector.broadcast %4 : i32 to vector<256x8xi32>
    %6 = arith.addi %3, %5 : vector<256x8xi32>
    %c0 = arith.constant 0 : index
    %c0_1 = arith.constant 0 : index
    %c0_2 = arith.constant 0 : index
    %7 = vector.load %arg2[%c0, %c0_1, %c0_2] : memref<1x1x8xi32, #tpu.memory_space<vmem>>, vector<1x1x8xi32>
    %8 = vector.shape_cast %7 : vector<1x1x8xi32> to vector<1x8xi32>
    %9 = vector.broadcast %8 : vector<1x8xi32> to vector<256x8xi32>
    %10 = arith.cmpi eq, %6, %9 : vector<256x8xi32>
    %11 = arith.extui %10 : vector<256x8xi1> to vector<256x8xi32>
    %12 = arith.sitofp %11 : vector<256x8xi32> to vector<256x8xf32>
    %c0_3 = arith.constant 0 : index
    %c0_4 = arith.constant 0 : index
    %13 = vector.load %arg7[%c0_3, %c0_4] : memref<4x8xf32, #tpu.memory_space<vmem>>, vector<4x8xf32>
    %c0_5 = arith.constant 0 : index
    %c0_6 = arith.constant 0 : index
    %c0_7 = arith.constant 0 : index
    %14 = vector.load %arg3[%c0_5, %c0_6, %c0_7] : memref<1x4x256xf32, #tpu.memory_space<vmem>>, vector<1x4x256xf32>
    %15 = vector.shape_cast %14 : vector<1x4x256xf32> to vector<4x256xf32>
    %cst = arith.constant dense<0.000000e+00> : vector<4x8xf32>
    %16 = tpu.matmul %15, %12, %cst {dimension_numbers = #tpu.dot_dimension_numbers<[1], [0], [0], [1], [0, 0, 1, 1], [], []>} : vector<4x256xf32>, vector<256x8xf32>, vector<4x8xf32> -> vector<4x8xf32>
    %17 = arith.addf %13, %16 : vector<4x8xf32>
    %c0_8 = arith.constant 0 : index
    %c0_9 = arith.constant 0 : index
    %18 = vector.load %arg7[%c0_8, %c0_9] : memref<4x8xf32, #tpu.memory_space<vmem>>, vector<4x8xf32>
    tpu.vector_store %arg7[%c0_8, %c0_9], %17 {strides = array<i32>} : memref<4x8xf32, #tpu.memory_space<vmem>>, vector<4x8xf32>,
    %c0_i32_10 = arith.constant 0 : i32
    %19 = arith.cmpi eq, %arg1, %c0_i32_10 : i32
    %20 = arith.extui %19 : i1 to i32
    %c0_i32_11 = arith.constant 0 : i32
    %21 = arith.cmpi ne, %20, %c0_i32_11 : i32
    scf.if %21 {
      %c0_12 = arith.constant 0 : index
      %c0_13 = arith.constant 0 : index
      %22 = vector.load %arg7[%c0_12, %c0_13] : memref<4x8xf32, #tpu.memory_space<vmem>>, vector<4x8xf32>
      %c0_14 = arith.constant 0 : index
      %c0_15 = arith.constant 0 : index
      %c0_16 = arith.constant 0 : index
      %23 = vector.load %arg4[%c0_14, %c0_15, %c0_16] : memref<1x4x8xf32, #tpu.memory_space<vmem>>, vector<1x4x8xf32>
      %24 = vector.shape_cast %23 : vector<1x4x8xf32> to vector<4x8xf32>
      %c0_17 = arith.constant 0 : index
      %c0_18 = arith.constant 0 : index
      %c0_19 = arith.constant 0 : index
      %25 = vector.load %arg5[%c0_17, %c0_18, %c0_19] : memref<1x1x8xf32, #tpu.memory_space<vmem>>, vector<1x1x8xf32>
      %26 = vector.shape_cast %25 : vector<1x1x8xf32> to vector<1x8xf32>
      %27 = arith.subf %22, %24 : vector<4x8xf32>
      %28 = vector.broadcast %26 : vector<1x8xf32> to vector<4x8xf32>
      %29 = arith.mulf %27, %28 : vector<4x8xf32>
      %30 = math.absf %29 : vector<4x8xf32>
      %31 = vector.shape_cast %30 : vector<4x8xf32> to vector<1x4x8xf32>
      %cst_20 = arith.constant dense<0.000000e+00> : vector<1xf32>
      %32 = vector.multi_reduction <add>, %31, %cst_20 [1, 2] : vector<1x4x8xf32> to vector<1xf32>
      %33 = vector.shape_cast %32 : vector<1xf32> to vector<1x1x1xf32>
      %34 = vector.extract %33[0, 0, 0] : f32 from vector<1x1x1xf32>
      %35 = vector.broadcast %34 : f32 to vector<1x1x1xf32>
      %c0_21 = arith.constant 0 : index
      %c0_22 = arith.constant 0 : index
      %c0_23 = arith.constant 0 : index
      %36 = vector.load %arg6[%c0_21, %c0_22, %c0_23] : memref<1x1x1xf32, #tpu.memory_space<vmem>>, vector<1x1x1xf32>
      tpu.vector_store %arg6[%c0_21, %c0_22, %c0_23], %35 {strides = array<i32>} : memref<1x1x1xf32, #tpu.memory_space<vmem>>, vector<1x1x1xf32>,
    } else {
    }
    return
  }
  func.func @transform_0(%arg0: i32, %arg1: i32) -> (i32, i32, i32) {
    %c0_i32 = arith.constant 0 : i32
    %c0_i32_0 = arith.constant 0 : i32
    %c0_i32_1 = arith.constant 0 : i32
    return %arg0, %c0_i32, %c0_i32_0 : i32, i32, i32
  }
  func.func @transform_1(%arg0: i32, %arg1: i32) -> (i32, i32, i32) {
    %c0_i32 = arith.constant 0 : i32
    %c0_i32_0 = arith.constant 0 : i32
    return %arg0, %c0_i32, %arg1 : i32, i32, i32
  }
  func.func @transform_2(%arg0: i32, %arg1: i32) -> (i32, i32, i32) {
    %c0_i32 = arith.constant 0 : i32
    %c0_i32_0 = arith.constant 0 : i32
    %c0_i32_1 = arith.constant 0 : i32
    return %arg0, %c0_i32, %c0_i32_0 : i32, i32, i32
  }
  func.func @transform_3(%arg0: i32, %arg1: i32) -> (i32, i32, i32) {
    %c0_i32 = arith.constant 0 : i32
    %c0_i32_0 = arith.constant 0 : i32
    %c0_i32_1 = arith.constant 0 : i32
    return %arg0, %c0_i32, %c0_i32_0 : i32, i32, i32
  }
  func.func @transform_4(%arg0: i32, %arg1: i32) -> (i32, i32, i32) {
    %c0_i32 = arith.constant 0 : i32
    %c0_i32_0 = arith.constant 0 : i32
    %c0_i32_1 = arith.constant 0 : i32
    return %arg0, %c0_i32, %c0_i32_0 : i32, i32, i32
  }
}

</mosaic_0001>

<llo_original>
// kernel: tpu_custom_call.1
$region0: #{tpu_custom_call.1}
  #allocation0 [shape = 'u32[]', space=smem, size = 0x4, offset = 0x4, fixed_abs, tag = 'smem constant byte address 0x4 - core index']
  #allocation1 [shape = 'u32[144,128]{1,0:T(1,128)}', space=vmem, size = 0x12000, scoped, tag = 'internal scratch']
  #allocation2 [shape = 'f32[4,8]{1,0:T(4,128)}', space=vmem, size = 0x800, scoped, tag = 'scratch operand']
  %s0 = inlined_call_operand.hbm [shape: s32[2,1,8], index: 0, kind: input, shape index: {}]
  %s1 = inlined_call_operand.hbm [shape: f32[2,4,256], index: 1, kind: input, shape index: {}]
  %s2 = inlined_call_operand.hbm [shape: f32[2,4,8], index: 2, kind: input, shape index: {}]
  %s3 = inlined_call_operand.vmem [shape: f32[2,1,8], index: 3, kind: input, shape index: {}]
  %s4 = inlined_call_operand.vmem [shape: f32[2,1,1], index: 4, kind: output, shape index: {}]
  %s5 = sld [smem:[#allocation0]]
  $region69: #{tpu_custom_call.1} parent=0
    _
  %s7 = ssub.s32 1, %s5
  %s8 = scalar_select 0, %s7, %s5
  $region1: #{tpu_custom_call.1} parent=0
    #allocation3 [shape = 'u8[1024]{0}', space=vmem, size = 0x400, scoped, tag = 'input window, operand 0']
    #allocation4 [shape = 's32[2]{0}', space=sflag, size = 0x8, scoped, tag = 'scoped memory for tpu_custom_call.1']
    #allocation5 [shape = 'u8[8192]{0}', space=vmem, size = 0x2000, scoped, tag = 'input window, operand 1']
    #allocation6 [shape = 's32[2]{0}', space=sflag, size = 0x8, scoped, tag = 'scoped memory for tpu_custom_call.1']
    #allocation7 [shape = 'u8[4096]{0}', space=vmem, size = 0x1000, scoped, tag = 'input window, operand 2']
    %9 = vsyncpa [#allocation4], 0
    %s10 = scalar_lea.sflag [#allocation4], 1
    %11 = vsyncpa %s10, 0
    %12 = vsyncpa [#allocation6], 0
    %s13 = scalar_lea.sflag [#allocation6], 1
    %14 = vsyncpa %s13, 0
    loop: start=0, step=1, limit=4
    $region2: #{tpu_custom_call.1} parent=1 // loop_pre_header
      _
    $region3: #{tpu_custom_call.1} parent=1 // loop_header
      %s16 = sphi 0, %s20
      %p17 = scmp.ge.s32.totalorder %s16, 4
      %s23 = sphi 0, %s35
      %s24 = sphi 0, %s31
      %s25 = sphi 0, %s23
      %s26 = sphi 0, %s24
      %s27 = sphi 0, %s25
      %s28 = sphi 0, %s26
      %s38 = sphi 0, %s40
      %s41 = sphi 0, %s38
      %s42 = sphi 0, %s41
      %s58 = sphi 0, %s42
      %s66 = sphi 0, %s68
      %s69 = sphi 0, %s66
      %s70 = sphi 0, %s69
      %s86 = sphi 0, %s70
      %s92 = sphi 0, %s94
      %s95 = sphi 0, %s92
      %s96 = sphi 0, %s95
      %s112 = sphi 0, %s96
      %s118 = sphi 0, %s120
      %s121 = sphi 0, %s118
      %s122 = sphi 0, %s121
      %s138 = sphi 0, %s122
      %s144 = sphi 0, %s146
      %s147 = sphi 0, %s144
      %s148 = sphi 0, %s147
      %s164 = sphi 0, %s148
    $region4: #{tpu_custom_call.1} parent=1 // loop_header_branch
      %19 = sbr.rel (%p17) target = $region8
    $region5: #{tpu_custom_call.1} parent=1 // loop_body
      %s21 = ssub.s32 %s16, 1
      %s22 = ssub.s32 %s16, 2
      %s29 = sadd.s32 1, %s24
      %p30 = scmp.ge.s32.totalorder %s29, 1
      %s31 = scalar_select %p30, 0, %s29
      %s32 = sadd.s32 1, %s23
      %s33 = scalar_select %p30, %s32, %s23
      %p34 = scmp.ge.s32.totalorder %s33, 2
      %s35 = scalar_select %p34, 0, %s33
      %s36 = ssub.s32 %s23, %s35
      %p37 = scmp.eq.s32.totalorder %s36, 0
      %s39 = sadd.s32 %s38, 1
      %s40 = scalar_select %p37, %s38, %s39
      %p43 = pneg %p37
      %p44 = scmp.eq.s32.totalorder %s16, 1
      %p45 = por %p43, %p44
      %p46 = scmp.ne.s32.totalorder %s38, %s41
      %p47 = scmp.eq.s32.totalorder %s16, 0
      %p48 = por %p46, %p47
      %p49 = scmp.ne.s32.totalorder %s38, %s41
      %p50 = scmp.eq.s32.totalorder %s21, 1
      %p51 = por %p49, %p50
      %p52 = scmp.ne.s32.totalorder %s41, %s42
      %p53 = scmp.eq.s32.totalorder %s21, 0
      %p54 = por %p52, %p53
      %p55 = scmp.ne.s32.totalorder %s41, %s42
      %p56 = scmp.eq.s32.totalorder %s22, 1
      %p57 = por %p55, %p56
      %p59 = scmp.ne.s32.totalorder %s42, %s58
      %p60 = scmp.eq.s32.totalorder %s22, 0
      %p61 = por %p59, %p60
      %s62 = ssub.s32 %s23, %s35
      %s63 = ssub.s32 %s24, %s31
      %s64 = sor.u32 %s62, %s63
      %p65 = scmp.eq.s32.totalorder %s64, 0
      %s67 = sadd.s32 %s66, 1
      %s68 = scalar_select %p65, %s66, %s67
      %p71 = pneg %p65
      %p72 = scmp.eq.s32.totalorder %s16, 1
      %p73 = por %p71, %p72
      %p74 = scmp.ne.s32.totalorder %s66, %s69
      %p75 = scmp.eq.s32.totalorder %s16, 0
      %p76 = por %p74, %p75
      %p77 = scmp.ne.s32.totalorder %s66, %s69
      %p78 = scmp.eq.s32.totalorder %s21, 1
      %p79 = por %p77, %p78
      %p80 = scmp.ne.s32.totalorder %s69, %s70
      %p81 = scmp.eq.s32.totalorder %s21, 0
      %p82 = por %p80, %p81
      %p83 = scmp.ne.s32.totalorder %s69, %s70
      %p84 = scmp.eq.s32.totalorder %s22, 1
      %p85 = por %p83, %p84
      %p87 = scmp.ne.s32.totalorder %s70, %s86
      %p88 = scmp.eq.s32.totalorder %s22, 0
      %p89 = por %p87, %p88
      %s90 = ssub.s32 %s23, %s35
      %p91 = scmp.eq.s32.totalorder %s90, 0
      %s93 = sadd.s32 %s92, 1
      %s94 = scalar_select %p91, %s92, %s93
      %p97 = pneg %p91
      %p98 = scmp.eq.s32.totalorder %s16, 1
      %p99 = por %p97, %p98
      %p100 = scmp.ne.s32.totalorder %s92, %s95
      %p101 = scmp.eq.s32.totalorder %s16, 0
      %p102 = por %p100, %p101
      %p103 = scmp.ne.s32.totalorder %s92, %s95
      %p104 = scmp.eq.s32.totalorder %s21, 1
      %p105 = por %p103, %p104
      %p106 = scmp.ne.s32.totalorder %s95, %s96
      %p107 = scmp.eq.s32.totalorder %s21, 0
      %p108 = por %p106, %p107
      %p109 = scmp.ne.s32.totalorder %s95, %s96
      %p110 = scmp.eq.s32.totalorder %s22, 1
      %p111 = por %p109, %p110
      %p113 = scmp.ne.s32.totalorder %s96, %s112
      %p114 = scmp.eq.s32.totalorder %s22, 0
      %p115 = por %p113, %p114
      %s116 = ssub.s32 %s23, %s35
      %p117 = scmp.eq.s32.totalorder %s116, 0
      %s119 = sadd.s32 %s118, 1
      %s120 = scalar_select %p117, %s118, %s119
      %p123 = pneg %p117
      %p124 = scmp.eq.s32.totalorder %s16, 1
      %p125 = por %p123, %p124
      %p126 = scmp.ne.s32.totalorder %s118, %s121
      %p127 = scmp.eq.s32.totalorder %s16, 0
      %p128 = por %p126, %p127
      %p129 = scmp.ne.s32.totalorder %s118, %s121
      %p130 = scmp.eq.s32.totalorder %s21, 1
      %p131 = por %p129, %p130
      %p132 = scmp.ne.s32.totalorder %s121, %s122
      %p133 = scmp.eq.s32.totalorder %s21, 0
      %p134 = por %p132, %p133
      %p135 = scmp.ne.s32.totalorder %s121, %s122
      %p136 = scmp.eq.s32.totalorder %s22, 1
      %p137 = por %p135, %p136
      %p139 = scmp.ne.s32.totalorder %s122, %s138
      %p140 = scmp.eq.s32.totalorder %s22, 0
      %p141 = por %p139, %p140
      %s142 = ssub.s32 %s23, %s35
      %p143 = scmp.eq.s32.totalorder %s142, 0
      %s145 = sadd.s32 %s144, 1
      %s146 = scalar_select %p143, %s144, %s145
      %p149 = pneg %p143
      %p150 = scmp.eq.s32.totalorder %s16, 1
      %p151 = por %p149, %p150
      %p152 = scmp.ne.s32.totalorder %s144, %s147
      %p153 = scmp.eq.s32.totalorder %s16, 0
      %p154 = por %p152, %p153
      %p155 = scmp.ne.s32.totalorder %s144, %s147
      %p156 = scmp.eq.s32.totalorder %s21, 1
      %p157 = por %p155, %p156
      %p158 = scmp.ne.s32.totalorder %s147, %s148
      %p159 = scmp.eq.s32.totalorder %s21, 0
      %p160 = por %p158, %p159
      %p161 = scmp.ne.s32.totalorder %s147, %s148
      %p162 = scmp.eq.s32.totalorder %s22, 1
      %p163 = por %p161, %p162
      %p165 = scmp.ne.s32.totalorder %s148, %s164
      %p166 = scmp.eq.s32.totalorder %s22, 0
      %p167 = por %p165, %p166
      %p168 = scmp.le.s32.totalorder 1, %s16
      %p169 = scmp.lt.s32.totalorder %s16, 3
      %p170 = pnand %p168, %p169
      %p171 = pneg %p170
      // Predicated region
      $region9: #{tpu_custom_call.1} parent=5 // pred_check
        _
      $region10: #{tpu_custom_call.1} parent=5 // pred_check_branch
        %173 = sbr.rel (%p170) target = $region12
      $region11: #{tpu_custom_call.1} parent=5 // pred_region
        %s174 = ssub.s32 %s16, 1
      $region12: #{tpu_custom_call.1} parent=5 // pred_fallthru
        _
      %p175 = scmp.lt.s32.totalorder %s16, 2
      // Predicated region
      $region13: #{tpu_custom_call.1} parent=5 // pred_check
        %p176 = pneg %p175
      $region14: #{tpu_custom_call.1} parent=5 // pred_check_branch
        %178 = sbr.rel (%p176) target = $region16
      $region15: #{tpu_custom_call.1} parent=5 // pred_region
        // Predicated region
        $region17: #{tpu_custom_call.1} parent=15 // pred_check
          %p179 = pneg %p48
        $region18: #{tpu_custom_call.1} parent=15 // pred_check_branch
          %181 = sbr.rel (%p179) target = $region20
        $region19: #{tpu_custom_call.1} parent=15 // pred_region
          %s182 = sand.u32 %s38, 1
          %s183 = scalar_lea.sflag [#allocation4], %s182
          %s184 = sand.u32 %s38, 1
          %s185 = scalar_lea.vmem [#allocation3], %s184
          %s187 = ssub.s32 16, 16
          %188 = vsyncadd %s183, %s187
          %s189 = smul.addr %s23, 16
          %s190 = scalar_lea.hbm %s0, %s189
          %s192 = sshll.u32 %s185, 4
          %s193 = int_to_ptr.vmem [resolvable:$true] %s192
          %195 = dma.hbm_to_vmem [thread:$0]  %s190, 16, %s193, %s183
        $region20: #{tpu_custom_call.1} parent=15 // pred_fallthru
          _
        // Predicated region
        $region21: #{tpu_custom_call.1} parent=15 // pred_check
          %p196 = pneg %p76
        $region22: #{tpu_custom_call.1} parent=15 // pred_check_branch
          %198 = sbr.rel (%p196) target = $region24
        $region23: #{tpu_custom_call.1} parent=15 // pred_region
          %s199 = sand.u32 %s16, 1
          %s200 = scalar_lea.sflag [#allocation6], %s199
          %s201 = sand.u32 %s66, 1
          %s202 = smul.addr %s201, 8
          %s203 = scalar_lea.vmem [#allocation5], %s202
          %s204 = smul.u32 2, %s24
          %s206 = ssub.s32 128, 128
          %207 = vsyncadd %s200, %s206
          %s208 = smul.addr %s23, 2
          %s209 = sadd.s32 %s204, %s208
          %s210 = smul.addr %s209, 64
          %s211 = scalar_lea.hbm %s1, %s210
          %s213 = sshll.u32 %s203, 4
          %s214 = int_to_ptr.vmem [resolvable:$true] %s213
          %216 = dma.hbm_to_vmem [thread:$0]  %s211, 128, %s214, %s200
        $region24: #{tpu_custom_call.1} parent=15 // pred_fallthru
          _
        // Predicated region
        $region25: #{tpu_custom_call.1} parent=15 // pred_check
          %p217 = pneg %p102
        $region26: #{tpu_custom_call.1} parent=15 // pred_check_branch
          %219 = sbr.rel (%p217) target = $region28
        $region27: #{tpu_custom_call.1} parent=15 // pred_region
          %s220 = sand.u32 %s16, 1
          %s221 = scalar_lea.sflag [#allocation6], %s220
          %s222 = sand.u32 %s92, 1
          %s223 = smul.addr %s222, 4
          %s224 = scalar_lea.vmem [#allocation7], %s223
          %s226 = ssub.s32 64, 64
          %227 = vsyncadd %s221, %s226
          %s228 = smul.addr %s23, 64
          %s229 = scalar_lea.hbm %s2, %s228
          %s231 = sshll.u32 %s224, 4
          %s232 = int_to_ptr.vmem [resolvable:$true] %s231
          %234 = dma.hbm_to_vmem [thread:$0]  %s229, 64, %s232, %s221
        $region28: #{tpu_custom_call.1} parent=15 // pred_fallthru
          _
        // Predicated region
        $region29: #{tpu_custom_call.1} parent=15 // pred_check
          %p235 = pneg %p128
        $region30: #{tpu_custom_call.1} parent=15 // pred_check_branch
          %237 = sbr.rel (%p235) target = $region32
        $region31: #{tpu_custom_call.1} parent=15 // pred_region
          %p238 = scmp.lt.s32.totalorder %s23, 1
          %s239 = scalar_select %p238, %s23, 1
          %s240 = scalar_lea.vmem %s3, %s239
        $region32: #{tpu_custom_call.1} parent=15 // pred_fallthru
          _
      $region16: #{tpu_custom_call.1} parent=5 // pred_fallthru
        _
      %p241 = scmp.le.s32.totalorder 1, %s16
      %p242 = scmp.lt.s32.totalorder %s16, 3
      %p243 = pnand %p241, %p242
      %p244 = pneg %p243
      // Predicated region
      $region33: #{tpu_custom_call.1} parent=5 // pred_check
        _
      $region34: #{tpu_custom_call.1} parent=5 // pred_check_branch
        %246 = sbr.rel (%p243) target = $region36
      $region35: #{tpu_custom_call.1} parent=5 // pred_region
        %s247 = ssub.s32 %s16, 1
        %s248 = sand.u32 %s41, 1
        %s249 = scalar_lea.sflag [#allocation4], %s248
        %s250 = sand.u32 %s41, 1
        %s251 = scalar_lea.vmem [#allocation3], %s250
        // Predicated region
        $region37: #{tpu_custom_call.1} parent=35 // pred_check
          %p252 = pneg %p54
        $region38: #{tpu_custom_call.1} parent=35 // pred_check_branch
          %254 = sbr.rel (%p252) target = $region40
        $region39: #{tpu_custom_call.1} parent=35 // pred_region
          %255 = dma.done %s249, 16
        $region40: #{tpu_custom_call.1} parent=35 // pred_fallthru
          _
        %s256 = sand.u32 %s21, 1
        %s257 = scalar_lea.sflag [#allocation6], %s256
        %s258 = sand.u32 %s69, 1
        %s259 = smul.addr %s258, 8
        %s260 = scalar_lea.vmem [#allocation5], %s259
        // Predicated region
        $region41: #{tpu_custom_call.1} parent=35 // pred_check
          %p261 = pneg %p82
        $region42: #{tpu_custom_call.1} parent=35 // pred_check_branch
          %263 = sbr.rel (%p261) target = $region44
        $region43: #{tpu_custom_call.1} parent=35 // pred_region
          %264 = dma.done %s257, 128
        $region44: #{tpu_custom_call.1} parent=35 // pred_fallthru
          _
        %s265 = sand.u32 %s21, 1
        %s266 = scalar_lea.sflag [#allocation6], %s265
        %s267 = sand.u32 %s95, 1
        %s268 = smul.addr %s267, 4
        %s269 = scalar_lea.vmem [#allocation7], %s268
        // Predicated region
        $region45: #{tpu_custom_call.1} parent=35 // pred_check
          %p270 = pneg %p108
        $region46: #{tpu_custom_call.1} parent=35 // pred_check_branch
          %272 = sbr.rel (%p270) target = $region48
        $region47: #{tpu_custom_call.1} parent=35 // pred_region
          %273 = dma.done %s266, 64
        $region48: #{tpu_custom_call.1} parent=35 // pred_fallthru
          _
        %s274 = sand.u32 %s41, 1
        %s275 = scalar_lea.sflag [#allocation4], %s274
        %s276 = sand.u32 %s41, 1
        %s277 = scalar_lea.vmem [#allocation3], %s276
        %p278 = pneg %p54
        %p279 = pneg %p51
        %s280 = sand.u32 %s21, 1
        %s281 = scalar_lea.sflag [#allocation6], %s280
        %s282 = sand.u32 %s69, 1
        %s283 = smul.addr %s282, 8
        %s284 = scalar_lea.vmem [#allocation5], %s283
        %p285 = pneg %p82
        %p286 = pneg %p79
        %s287 = sand.u32 %s21, 1
        %s288 = scalar_lea.sflag [#allocation6], %s287
        %s289 = sand.u32 %s95, 1
        %s290 = smul.addr %s289, 4
        %s291 = scalar_lea.vmem [#allocation7], %s290
        %p292 = pneg %p108
        %p293 = pneg %p105
        %p294 = scmp.lt.s32.totalorder %s25, 1
        %s295 = scalar_select %p294, %s25, 1
        %s296 = scalar_lea.vmem %s3, %s295
        %p297 = pneg %p134
        %p298 = pneg %p131
        %p299 = pneg %p160
        %p300 = pneg %p157
        %p301 = scmp.lt.s32.totalorder %s25, 1
        %s302 = scalar_select %p301, %s25, 1
        %s303 = scalar_lea.vmem %s4, %s302
        %s304 = smul.u32 2, %s26
        %p305 = scmp.lt.s32.totalorder %s25, 1
        %s306 = scalar_select %p305, %s25, 1
        %s307 = scalar_lea.vmem %s3, %s306
        %p308 = scmp.lt.s32.totalorder %s25, 1
        %s309 = scalar_select %p308, %s25, 1
        %s310 = scalar_lea.vmem %s4, %s309
        %p311 = scmp.eq.s32.totalorder %s26, 0
        // Predicated region
        $region49: #{tpu_custom_call.1} parent=35 // pred_check
          %p312 = pneg %p311
        $region50: #{tpu_custom_call.1} parent=35 // pred_check_branch
          %314 = sbr.rel (%p312) target = $region52
        $region51: #{tpu_custom_call.1} parent=35 // pred_region
          %vm315 = vcmask 60416
          %316 = vst.msk [vmem:[#allocation2] sm:$0xf] %vm315, 0.0
        $region52: #{tpu_custom_call.1} parent=35 // pred_fallthru
          _
        %v317 = vlaneseq
        %v318 = vshrl.u32 %v317, 7
        %v319 = vadd.s32 %v318, 8
        %v320 = vadd.s32 %v318, 16
        %v321 = vadd.s32 %v318, 24
        %v322 = vadd.s32 %v318, 32
        %v323 = vadd.s32 %v318, 40
        %v324 = vadd.s32 %v318, 48
        %v325 = vadd.s32 %v318, 56
        %v326 = vadd.s32 %v318, 64
        %v327 = vadd.s32 %v318, 72
        %v328 = vadd.s32 %v318, 80
        %v329 = vadd.s32 %v318, 88
        %v330 = vadd.s32 %v318, 96
        %v331 = vadd.s32 %v318, 104
        %v332 = vadd.s32 %v318, 112
        %v333 = vadd.s32 %v318, 120
        %v334 = vadd.s32 %v318, 128
        %v335 = vadd.s32 %v318, 136
        %v336 = vadd.s32 %v318, 144
        %v337 = vadd.s32 %v318, 152
        %v338 = vadd.s32 %v318, 160
        %v339 = vadd.s32 %v318, 168
        %v340 = vadd.s32 %v318, 176
        %v341 = vadd.s32 %v318, 184
        %v342 = vadd.s32 %v318, 192
        %v343 = vadd.s32 %v318, 200
        %v344 = vadd.s32 %v318, 208
        %v345 = vadd.s32 %v318, 216
        %v346 = vadd.s32 %v318, 224
        %v347 = vadd.s32 %v318, 232
        %v348 = vadd.s32 %v318, 240
        %v349 = vadd.s32 %v318, 248
        %s350 = smul.u32 %s26, 256
        %v351 = vstv %s350
        %v352 = vadd.s32 %v318, %v351
        %v353 = vadd.s32 %v319, %v351
        %v354 = vadd.s32 %v320, %v351
        %v355 = vadd.s32 %v321, %v351
        %v356 = vadd.s32 %v322, %v351
        %v357 = vadd.s32 %v323, %v351
        %v358 = vadd.s32 %v324, %v351
        %v359 = vadd.s32 %v325, %v351
        %v360 = vadd.s32 %v326, %v351
        %v361 = vadd.s32 %v327, %v351
        %v362 = vadd.s32 %v328, %v351
        %v363 = vadd.s32 %v329, %v351
        %v364 = vadd.s32 %v330, %v351
        %v365 = vadd.s32 %v331, %v351
        %v366 = vadd.s32 %v332, %v351
        %v367 = vadd.s32 %v333, %v351
        %v368 = vadd.s32 %v334, %v351
        %v369 = vadd.s32 %v335, %v351
        %v370 = vadd.s32 %v336, %v351
        %v371 = vadd.s32 %v337, %v351
        %v372 = vadd.s32 %v338, %v351
        %v373 = vadd.s32 %v339, %v351
        %v374 = vadd.s32 %v340, %v351
        %v375 = vadd.s32 %v341, %v351
        %v376 = vadd.s32 %v342, %v351
        %v377 = vadd.s32 %v343, %v351
        %v378 = vadd.s32 %v344, %v351
        %v379 = vadd.s32 %v345, %v351
        %v380 = vadd.s32 %v346, %v351
        %v381 = vadd.s32 %v347, %v351
        %v382 = vadd.s32 %v348, %v351
        %v383 = vadd.s32 %v349, %v351
        %v384 = vld [vmem:[%s251] sm:$0x1]
        %v385 = vlaneseq
        %v386 = vshrl.u32 %v385, 7
        %v387 = vsub.s32 0, %v386
        %v388 = vrot.slane %v384, %v387
        %vm389 = vcmp.eq.s32.totalorder %v352, %v388
        %vm390 = vcmp.eq.s32.totalorder %v353, %v388
        %vm391 = vcmp.eq.s32.totalorder %v354, %v388
        %vm392 = vcmp.eq.s32.totalorder %v355, %v388
        %vm393 = vcmp.eq.s32.totalorder %v356, %v388
        %vm394 = vcmp.eq.s32.totalorder %v357, %v388
        %vm395 = vcmp.eq.s32.totalorder %v358, %v388
        %vm396 = vcmp.eq.s32.totalorder %v359, %v388
        %vm397 = vcmp.eq.s32.totalorder %v360, %v388
        %vm398 = vcmp.eq.s32.totalorder %v361, %v388
        %vm399 = vcmp.eq.s32.totalorder %v362, %v388
        %vm400 = vcmp.eq.s32.totalorder %v363, %v388
        %vm401 = vcmp.eq.s32.totalorder %v364, %v388
        %vm402 = vcmp.eq.s32.totalorder %v365, %v388
        %vm403 = vcmp.eq.s32.totalorder %v366, %v388
        %vm404 = vcmp.eq.s32.totalorder %v367, %v388
        %vm405 = vcmp.eq.s32.totalorder %v368, %v388
        %vm406 = vcmp.eq.s32.totalorder %v369, %v388
        %vm407 = vcmp.eq.s32.totalorder %v370, %v388
        %vm408 = vcmp.eq.s32.totalorder %v371, %v388
        %vm409 = vcmp.eq.s32.totalorder %v372, %v388
        %vm410 = vcmp.eq.s32.totalorder %v373, %v388
        %vm411 = vcmp.eq.s32.totalorder %v374, %v388
        %vm412 = vcmp.eq.s32.totalorder %v375, %v388
        %vm413 = vcmp.eq.s32.totalorder %v376, %v388
        %vm414 = vcmp.eq.s32.totalorder %v377, %v388
        %vm415 = vcmp.eq.s32.totalorder %v378, %v388
        %vm416 = vcmp.eq.s32.totalorder %v379, %v388
        %vm417 = vcmp.eq.s32.totalorder %v380, %v388
        %vm418 = vcmp.eq.s32.totalorder %v381, %v388
        %vm419 = vcmp.eq.s32.totalorder %v382, %v388
        %vm420 = vcmp.eq.s32.totalorder %v383, %v388
        %v421 = vsel %vm389, 1, 0
        %v422 = vsel %vm390, 1, 0
        %v423 = vsel %vm391, 1, 0
        %v424 = vsel %vm392, 1, 0
        %v425 = vsel %vm393, 1, 0
        %v426 = vsel %vm394, 1, 0
        %v427 = vsel %vm395, 1, 0
        %v428 = vsel %vm396, 1, 0
        %v429 = vsel %vm397, 1, 0
        %v430 = vsel %vm398, 1, 0
        %v431 = vsel %vm399, 1, 0
        %v432 = vsel %vm400, 1, 0
        %v433 = vsel %vm401, 1, 0
        %v434 = vsel %vm402, 1, 0
        %v435 = vsel %vm403, 1, 0
        %v436 = vsel %vm404, 1, 0
        %v437 = vsel %vm405, 1, 0
        %v438 = vsel %vm406, 1, 0
        %v439 = vsel %vm407, 1, 0
        %v440 = vsel %vm408, 1, 0
        %v441 = vsel %vm409, 1, 0
        %v442 = vsel %vm410, 1, 0
        %v443 = vsel %vm411, 1, 0
        %v444 = vsel %vm412, 1, 0
        %v445 = vsel %vm413, 1, 0
        %v446 = vsel %vm414, 1, 0
        %v447 = vsel %vm415, 1, 0
        %v448 = vsel %vm416, 1, 0
        %v449 = vsel %vm417, 1, 0
        %v450 = vsel %vm418, 1, 0
        %v451 = vsel %vm419, 1, 0
        %v452 = vsel %vm420, 1, 0
        %v453 = vcvt.s32.f32 %v421
        %v454 = vcvt.s32.f32 %v422
        %v455 = vcvt.s32.f32 %v423
        %v456 = vcvt.s32.f32 %v424
        %v457 = vcvt.s32.f32 %v425
        %v458 = vcvt.s32.f32 %v426
        %v459 = vcvt.s32.f32 %v427
        %v460 = vcvt.s32.f32 %v428
        %v461 = vcvt.s32.f32 %v429
        %v462 = vcvt.s32.f32 %v430
        %v463 = vcvt.s32.f32 %v431
        %v464 = vcvt.s32.f32 %v432
        %v465 = vcvt.s32.f32 %v433
        %v466 = vcvt.s32.f32 %v434
        %v467 = vcvt.s32.f32 %v435
        %v468 = vcvt.s32.f32 %v436
        %v469 = vcvt.s32.f32 %v437
        %v470 = vcvt.s32.f32 %v438
        %v471 = vcvt.s32.f32 %v439
        %v472 = vcvt.s32.f32 %v440
        %v473 = vcvt.s32.f32 %v441
        %v474 = vcvt.s32.f32 %v442
        %v475 = vcvt.s32.f32 %v443
        %v476 = vcvt.s32.f32 %v444
        %v477 = vcvt.s32.f32 %v445
        %v478 = vcvt.s32.f32 %v446
        %v479 = vcvt.s32.f32 %v447
        %v480 = vcvt.s32.f32 %v448
        %v481 = vcvt.s32.f32 %v449
        %v482 = vcvt.s32.f32 %v450
        %v483 = vcvt.s32.f32 %v451
        %v484 = vcvt.s32.f32 %v452
        %v485 = vld [vmem:[#allocation2] sm:$0xf]
        %v486 = vld [vmem:[%s260] sm:$0xff]
        %v488 = vcombine.high %v486, %v486
        %490 = vmatprep.subr.mxu0 0.0
        %491 = vmatpush1.msra.mxu0 %v453
        %492 = vmatprep.subr.mxu0 0.0
        %493 = vmatpush1.msra.mxu0 %v454
        %494 = vmatprep.subr.mxu0 0.0
        %495 = vmatpush1.msra.mxu0 %v455
        %496 = vmatprep.subr.mxu0 0.0
        %497 = vmatpush1.msra.mxu0 %v456
        %498 = vmatprep.subr.mxu0 0.0
        %499 = vmatpush1.msra.mxu0 %v457
        %500 = vmatprep.subr.mxu0 0.0
        %501 = vmatpush1.msra.mxu0 %v458
        %502 = vmatprep.subr.mxu0 0.0
        %503 = vmatpush1.msra.mxu0 %v459
        %504 = vmatprep.subr.mxu0 0.0
        %505 = vmatpush1.msra.mxu0 %v460
        %506 = vmatprep.subr.mxu0 0.0
        %507 = vmatpush1.msra.mxu0 %v461
        %508 = vmatprep.subr.mxu0 0.0
        %509 = vmatpush1.msra.mxu0 %v462
        %510 = vmatprep.subr.mxu0 0.0
        %511 = vmatpush1.msra.mxu0 %v463
        %512 = vmatprep.subr.mxu0 0.0
        %513 = vmatpush1.msra.mxu0 %v464
        %514 = vmatprep.subr.mxu0 0.0
        %515 = vmatpush1.msra.mxu0 %v465
        %516 = vmatprep.subr.mxu0 0.0
        %517 = vmatpush1.msra.mxu0 %v466
        %518 = vmatprep.subr.mxu0 0.0
        %519 = vmatpush1.msra.mxu0 %v467
        %520 = vmatprep.subr.mxu0 0.0
        %521 = vmatpush1.msra.mxu0 %v468
        %522 = vmatprep.subr.mxu0 0.0
        %523 = vmatpush1.msra.mxu0 %v469
        %524 = vmatprep.subr.mxu0 0.0
        %525 = vmatpush1.msra.mxu0 %v470
        %526 = vmatprep.subr.mxu0 0.0
        %527 = vmatpush1.msra.mxu0 %v471
        %528 = vmatprep.subr.mxu0 0.0
        %529 = vmatpush1.msra.mxu0 %v472
        %530 = vmatprep.subr.mxu0 0.0
        %531 = vmatpush1.msra.mxu0 %v473
        %532 = vmatprep.subr.mxu0 0.0
        %533 = vmatpush1.msra.mxu0 %v474
        %534 = vmatprep.subr.mxu0 0.0
        %535 = vmatpush1.msra.mxu0 %v475
        %536 = vmatprep.subr.mxu0 0.0
        %537 = vmatpush1.msra.mxu0 %v476
        %538 = vmatprep.subr.mxu0 0.0
        %539 = vmatpush1.msra.mxu0 %v477
        %540 = vmatprep.subr.mxu0 0.0
        %541 = vmatpush1.msra.mxu0 %v478
        %542 = vmatprep.subr.mxu0 0.0
        %543 = vmatpush1.msra.mxu0 %v479
        %544 = vmatprep.subr.mxu0 0.0
        %545 = vmatpush1.msra.mxu0 %v480
        %546 = vmatprep.subr.mxu0 0.0
        %547 = vmatpush1.msra.mxu0 %v481
        %548 = vmatprep.subr.mxu0 0.0
        %549 = vmatpush1.msra.mxu0 %v482
        %550 = vmatprep.subr.mxu0 0.0
        %551 = vmatpush1.msra.mxu0 %v483
        %552 = vmatprep.subr.mxu0 0.0
        %553 = vmatpush1.msra.mxu0 %v484
        %554 = vmatprep.mubr.f32.mxu0 %v488
        %555 = vmatmul.mubr.f32.gmra.mrb[0].mxu0 %v486
        %v556 = vpop.f32.mrb[0].mxu0
        %v557 = vadd.f32 0.0, %v556
        %v558 = vpop.f32.mrb[0].mxu0
        %559 = vdwg.mxu0
        %v560 = vadd.f32 %v485, %v557
        %vm561 = vcmask 60416
        %562 = vst.msk [vmem:[#allocation2] sm:$0xf] %vm561, %v560
        // Predicated region
        $region53: #{tpu_custom_call.1} parent=35 // pred_check
          %p563 = pneg %p311
        $region54: #{tpu_custom_call.1} parent=35 // pred_check_branch
          %565 = sbr.rel (%p563) target = $region56
        $region55: #{tpu_custom_call.1} parent=35 // pred_region
          %v566 = vld [vmem:[#allocation2] sm:$0xf]
          %v567 = vld [vmem:[%s269] sm:$0xf]
          %v568 = vld [vmem:[%s307] sm:$0x1]
          %v569 = vsub.f32 %v566, %v567
          %v571 = vlaneseq
          %v572 = vshrl.u32 %v571, 7
          %v573 = vsub.s32 0, %v572
          %v574 = vrot.slane %v568, %v573
          %v576 = vmul.f32 %v569, %v574
          %v577 = vand.u32 2147483647, %v576
          %v578 = vsel %vm561, %v577, 0.0
          %579 = vadd.xlane.f32.xlu0 %v578
          %v580 = vpop.xlane.xlu0 %579
          %v581 = vrot.slane %v580, 4
          %v582 = vadd.f32 %v580, %v581
          %v583 = vrot.slane %v582, 2
          %v584 = vadd.f32 %v582, %v583
          %v585 = vrot.slane %v584, 1
          %v586 = vadd.f32 %v584, %v585
          %s587 = vtos %v586
          %v588 = vstv %s587
          %vm589 = vcmask 0
          %590 = vst.msk [vmem:[%s310] sm:$0x1] %vm589, %v588
        $region56: #{tpu_custom_call.1} parent=35 // pred_fallthru
          _
        %p591 = scmp.lt.s32.totalorder %s25, 1
        %s592 = scalar_select %p591, %s25, 1
        %s593 = scalar_lea.vmem %s4, %s592
        // Predicated region
        $region57: #{tpu_custom_call.1} parent=35 // pred_check
          %p594 = pneg %p157
        $region58: #{tpu_custom_call.1} parent=35 // pred_check_branch
          %596 = sbr.rel (%p594) target = $region60
        $region59: #{tpu_custom_call.1} parent=35 // pred_region
          _
        $region60: #{tpu_custom_call.1} parent=35 // pred_fallthru
          _
      $region36: #{tpu_custom_call.1} parent=5 // pred_fallthru
        _
      %p597 = scmp.le.s32.totalorder 2, %s16
      // Predicated region
      $region61: #{tpu_custom_call.1} parent=5 // pred_check
        %p598 = pneg %p597
      $region62: #{tpu_custom_call.1} parent=5 // pred_check_branch
        %600 = sbr.rel (%p598) target = $region64
      $region63: #{tpu_custom_call.1} parent=5 // pred_region
        %s601 = ssub.s32 %s16, 2
        // Predicated region
        $region65: #{tpu_custom_call.1} parent=63 // pred_check
          %p602 = pneg %p163
        $region66: #{tpu_custom_call.1} parent=63 // pred_check_branch
          %604 = sbr.rel (%p602) target = $region68
        $region67: #{tpu_custom_call.1} parent=63 // pred_region
          %p605 = scmp.lt.s32.totalorder %s27, 1
          %s606 = scalar_select %p605, %s27, 1
          %s607 = scalar_lea.vmem %s4, %s606
        $region68: #{tpu_custom_call.1} parent=63 // pred_fallthru
          _
      $region64: #{tpu_custom_call.1} parent=5 // pred_fallthru
        _
    $region6: #{tpu_custom_call.1} parent=1 // loop_footer
      %s20 = sadd.s32 1, %s16
    $region7: #{tpu_custom_call.1} parent=1 // loop_footer_branch
      %15 = sbr.rel target = $region3
    $region8: #{tpu_custom_call.1} parent=1 // loop_exit
      _
    %608 = vsyncpa [#allocation4], 1
    %s609 = scalar_lea.sflag [#allocation4], 1
    %610 = vsyncpa %s609, 1
    %611 = vsyncpa [#allocation6], 1
    %s612 = scalar_lea.sflag [#allocation6], 1
    %613 = vsyncpa %s612, 1

</llo_original>
